<compile_context>
chip_gen: v7x
topology: tpu7x:2x2x1
jax: 0.10.0
libtpu: 0.0.40
codegen_flags: <defaults>
</compile_context>

<pallas_src>
import jax
import jax.numpy as jnp
from jax.experimental import pallas as pl
from jax.experimental.pallas import tpu as pltpu


_SMALL_C_THRESHOLD = 16       # at/below this the channel mix runs on the VPU
_VMEM_BUDGET = 40 << 20       # conservative working-set budget (v7x: 64 MiB)


def _make_residual_kernel(C, use_vpu, compute_dtype):
    def kernel(x_ref, w_ref, o_ref):
        # x_ref: (1, C, TS)  channels on sublanes, spatial lane-dense
        # w_ref: (C, C)      1x1-conv weight, (out, in)
        # o_ref: (1, C, TS)
        x = x_ref[0]
        w = w_ref[...]
        xf = x.astype(jnp.float32)
        if use_vpu:
            # Tiny channel count: do the channel mix as C broadcast-FMAs over
            # the lane-dense spatial axis on the VPU.
            wf = w.astype(jnp.float32)
            y = wf[:, 0:1] * xf[0:1, :]
            for c in range(1, C):
                y = y + wf[:, c:c + 1] * xf[c:c + 1, :]
        else:
            # fn(x): 1x1 conv as an MXU matmul, f32 accumulation.  Cast the
            # LHS operand in-VMEM (no extra HBM pass) if compute_dtype given.
            xm = x if compute_dtype is None else x.astype(compute_dtype)
            y = jnp.dot(w, xm, preferred_element_type=jnp.float32)
        o_ref[0] = (y + xf).astype(o_ref.dtype)  # fn(x) + x
    return kernel


def residual_forward(x_nchw, weight, *, block_bytes_target=4 << 20,
                     compute_dtype=None):
    """Compute fn(x) + x where fn is a 1x1 conv with `weight` (C_out==C_in).

    x_nchw: (N, C, H, W)   weight: (C, C)  [out, in]
    block_bytes_target: target activation bytes per block (sweep per chip).
    compute_dtype: optional matmul-operand dtype (e.g. jnp.bfloat16 on
        v6e/v7x).  Only the in-kernel matmul operands are cast; accumulation
        and residual add stay in f32, output keeps the input dtype.
    """
    N, C, H, W = x_nchw.shape
    assert weight.shape == (C, C)
    S = H * W
    out_dtype = x_nchw.dtype

    # NCHW -> (N, C, S): contiguous-dim reshape, no data movement.
    x3 = x_nchw.reshape(N, C, S)
    itemsize = x3.dtype.itemsize
    out_itemsize = jnp.dtype(out_dtype).itemsize
    if compute_dtype is not None:
        weight = weight.astype(compute_dtype)      # tiny (CxC), negligible
    w_itemsize = weight.dtype.itemsize

    def vmem_bytes_for(ts):
        # double-buffered x & out blocks + double-buffered weight + slack
        return (2 * C * ts * itemsize
                + 2 * C * ts * out_itemsize
                + 2 * C * C * w_itemsize
                + (2 << 20))

    # Spatial tile: lane-dense (multiple of 128, or full S), sized so each
    # x block is ~block_bytes_target to amortize per-grid-step overhead,
    # then clamped so the double-buffered working set fits the VMEM budget.
    ts_raw = max(1, int(block_bytes_target) // max(1, C * itemsize))
    if ts_raw >= S:
        ts = S
    else:
        ts = max(128, (ts_raw // 128) * 128)
        ts = min(ts, S)
    while ts > 128 and ts < S and vmem_bytes_for(ts) > _VMEM_BUDGET:
        ts = max(128, ((ts // 2) // 128) * 128)
    if ts >= S:
        ts, num_s = S, 1
    else:
        num_s = int(pl.cdiv(S, ts))    # ragged tail masked by Pallas

    vmem_limit = int(min(max(vmem_bytes_for(ts), 32 << 20), 64 << 20))

    cost = pl.CostEstimate(
        flops=2 * N * S * C * C,
        transcendentals=0,
        bytes_accessed=N * C * S * (itemsize + out_itemsize)
        + C * C * w_itemsize,
    )

    kernel = _make_residual_kernel(
        C, use_vpu=(C <= _SMALL_C_THRESHOLD), compute_dtype=compute_dtype)

    out3 = pl.pallas_call(
        kernel,
        out_shape=jax.ShapeDtypeStruct((N, C, S), out_dtype),
        grid_spec=pltpu.PrefetchScalarGridSpec(
            num_scalar_prefetch=0,
            grid=(N, num_s),
            in_specs=[
                pl.BlockSpec((1, C, ts), lambda n, s: (n, 0, s)),
                pl.BlockSpec((C, C), lambda n, s: (0, 0)),
            ],
            out_specs=pl.BlockSpec((1, C, ts), lambda n, s: (n, 0, s)),
        ),
        compiler_params=pltpu.CompilerParams(
            # All grid points independent -> megacore sharding on v7x.
            dimension_semantics=("parallel", "parallel"),
            vmem_limit_bytes=vmem_limit,
        ),
        cost_estimate=cost,
    )(x3, weight)

    return out3.reshape(N, C, H, W)


if __name__ == "__main__":
    key = jax.random.PRNGKey(0)
    kx, kw, kx2, kw2 = jax.random.split(key, 4)

    # --- test 1: module-sized shapes (N=2, C=4, H=W=16), f32, VPU path ---
    N, C, H, W = 2, 4, 16, 16
    x = jax.random.normal(kx, (N, C, H, W), dtype=jnp.float32)
    weight = (jax.random.normal(kw, (C, C), dtype=jnp.float32)
              * (1.0 / jnp.sqrt(C)))
    out = jax.block_until_ready(residual_forward(x, weight))
    ref = jnp.einsum("oc,nchw->nohw", weight, x,
                     precision=jax.lax.Precision.HIGHEST) + x
    assert out.shape == x.shape
    assert jnp.allclose(out, ref, atol=1e-5, rtol=1e-5)

    # --- test 2: larger C, ragged spatial tiling (S=576 -> 5 tiles), MXU ---
    N2, C2, H2, W2 = 1, 128, 24, 24
    x2 = jax.random.normal(kx2, (N2, C2, H2, W2), dtype=jnp.float32)
    w2 = (jax.random.normal(kw2, (C2, C2), dtype=jnp.float32)
          * (1.0 / jnp.sqrt(C2)))
    out2 = jax.block_until_ready(
        residual_forward(x2, w2, block_bytes_target=C2 * 128 * 4))
    ref2 = jnp.einsum("oc,nchw->nohw", w2, x2,
                      precision=jax.lax.Precision.HIGHEST) + x2
    assert out2.shape == x2.shape
    assert jnp.allclose(out2, ref2, atol=1e-3, rtol=1e-3)

    # --- test 3: bf16 matmul operands (v6e/v7x MXU path), f32 accumulate ---
    out3 = jax.block_until_ready(
        residual_forward(x2, w2, compute_dtype=jnp.bfloat16))
    assert out3.dtype == x2.dtype
    assert jnp.allclose(out3, ref2, atol=5e-2, rtol=5e-2)

    print("KERNEL_OK")
</pallas_src>

<mosaic_0001>
module attributes {stable_mosaic.version = 11 : i64} {
  func.func @kernel(%arg0: i32, %arg1: i32, %arg2: memref<1x4x256xf32, #tpu.memory_space<vmem>>, %arg3: memref<4x4xf32, #tpu.memory_space<vmem>>, %arg4: memref<1x4x256xf32, #tpu.memory_space<vmem>>) attributes {dimension_semantics = [#tpu.dimension_semantics<parallel>, #tpu.dimension_semantics<parallel>], iteration_bounds = array<i64: 2, 1>, scalar_prefetch = 0 : i64, scratch_operands = 0 : i64, tpu.core_type = #tpu.core_type<tc>, window_params = [{transform_indices = @transform_0, window_bounds = array<i64: 1, 4, 256>}, {pipeline_mode = #tpu.pipeline_mode<synchronous>, transform_indices = @transform_1, window_bounds = array<i64: 4, 4>}, {transform_indices = @transform_2, window_bounds = array<i64: 1, 4, 256>}]} {
    %c0 = arith.constant 0 : index
    %c0_0 = arith.constant 0 : index
    %c0_1 = arith.constant 0 : index
    %0 = vector.load %arg2[%c0, %c0_0, %c0_1] : memref<1x4x256xf32, #tpu.memory_space<vmem>>, vector<1x4x256xf32>
    %1 = vector.shape_cast %0 : vector<1x4x256xf32> to vector<4x256xf32>
    %c0_2 = arith.constant 0 : index
    %c0_3 = arith.constant 0 : index
    %2 = vector.load %arg3[%c0_2, %c0_3] : memref<4x4xf32, #tpu.memory_space<vmem>>, vector<4x4xf32>
    %3 = vector.extract_strided_slice %2 {offsets = [0, 0], sizes = [4, 1], strides = [1, 1]} : vector<4x4xf32> to vector<4x1xf32>
    %4 = vector.extract_strided_slice %1 {offsets = [0, 0], sizes = [1, 256], strides = [1, 1]} : vector<4x256xf32> to vector<1x256xf32>
    %5 = vector.broadcast %3 : vector<4x1xf32> to vector<4x256xf32>
    %6 = vector.broadcast %4 : vector<1x256xf32> to vector<4x256xf32>
    %7 = arith.mulf %5, %6 : vector<4x256xf32>
    %8 = vector.extract_strided_slice %2 {offsets = [0, 1], sizes = [4, 1], strides = [1, 1]} : vector<4x4xf32> to vector<4x1xf32>
    %9 = vector.extract_strided_slice %1 {offsets = [1, 0], sizes = [1, 256], strides = [1, 1]} : vector<4x256xf32> to vector<1x256xf32>
    %10 = vector.broadcast %8 : vector<4x1xf32> to vector<4x256xf32>
    %11 = vector.broadcast %9 : vector<1x256xf32> to vector<4x256xf32>
    %12 = arith.mulf %10, %11 : vector<4x256xf32>
    %13 = arith.addf %7, %12 : vector<4x256xf32>
    %14 = vector.extract_strided_slice %2 {offsets = [0, 2], sizes = [4, 1], strides = [1, 1]} : vector<4x4xf32> to vector<4x1xf32>
    %15 = vector.extract_strided_slice %1 {offsets = [2, 0], sizes = [1, 256], strides = [1, 1]} : vector<4x256xf32> to vector<1x256xf32>
    %16 = vector.broadcast %14 : vector<4x1xf32> to vector<4x256xf32>
    %17 = vector.broadcast %15 : vector<1x256xf32> to vector<4x256xf32>
    %18 = arith.mulf %16, %17 : vector<4x256xf32>
    %19 = arith.addf %13, %18 : vector<4x256xf32>
    %20 = vector.extract_strided_slice %2 {offsets = [0, 3], sizes = [4, 1], strides = [1, 1]} : vector<4x4xf32> to vector<4x1xf32>
    %21 = vector.extract_strided_slice %1 {offsets = [3, 0], sizes = [1, 256], strides = [1, 1]} : vector<4x256xf32> to vector<1x256xf32>
    %22 = vector.broadcast %20 : vector<4x1xf32> to vector<4x256xf32>
    %23 = vector.broadcast %21 : vector<1x256xf32> to vector<4x256xf32>
    %24 = arith.mulf %22, %23 : vector<4x256xf32>
    %25 = arith.addf %19, %24 : vector<4x256xf32>
    %26 = arith.addf %25, %1 : vector<4x256xf32>
    %c0_4 = arith.constant 0 : index
    %c0_5 = arith.constant 0 : index
    %c0_6 = arith.constant 0 : index
    %27 = vector.load %arg4[%c0_4, %c0_5, %c0_6] : memref<1x4x256xf32, #tpu.memory_space<vmem>>, vector<1x4x256xf32>
    %28 = vector.shape_cast %27 : vector<1x4x256xf32> to vector<4x256xf32>
    %29 = vector.shape_cast %26 : vector<4x256xf32> to vector<1x4x256xf32>
    tpu.vector_store %arg4[%c0_4, %c0_5, %c0_6], %29 {strides = array<i32>} : memref<1x4x256xf32, #tpu.memory_space<vmem>>, vector<1x4x256xf32>,
    return
  }
  func.func @transform_0(%arg0: i32, %arg1: i32) -> (i32, i32, i32) {
    %c0_i32 = arith.constant 0 : i32
    %c0_i32_0 = arith.constant 0 : i32
    return %arg0, %c0_i32, %arg1 : i32, i32, i32
  }
  func.func @transform_1(%arg0: i32, %arg1: i32) -> (i32, i32) {
    %c0_i32 = arith.constant 0 : i32
    %c0_i32_0 = arith.constant 0 : i32
    %c0_i32_1 = arith.constant 0 : i32
    return %c0_i32, %c0_i32_0 : i32, i32
  }
  func.func @transform_2(%arg0: i32, %arg1: i32) -> (i32, i32, i32) {
    %c0_i32 = arith.constant 0 : i32
    %c0_i32_0 = arith.constant 0 : i32
    return %arg0, %c0_i32, %arg1 : i32, i32, i32
  }
}

</mosaic_0001>

<llo_original>
// kernel: tpu_custom_call.1
$region0: #{tpu_custom_call.1}
  #allocation0 [shape = 'u32[]', space=smem, size = 0x4, offset = 0x4, fixed_abs, tag = 'smem constant byte address 0x4 - core index']
  #allocation1 [shape = 'u32[144,128]{1,0:T(1,128)}', space=vmem, size = 0x12000, scoped, tag = 'internal scratch']
  %s0 = inlined_call_operand.hbm [shape: f32[2,4,256], index: 0, kind: input, shape index: {}]
  %s1 = inlined_call_operand.hbm [shape: f32[4,4], index: 1, kind: input, shape index: {}]
  %s2 = inlined_call_operand.hbm [shape: f32[2,4,256], index: 2, kind: output, shape index: {}]
  %s3 = sld [smem:[#allocation0]]
  $region49: #{tpu_custom_call.1} parent=0
    _
  %s5 = ssub.s32 1, %s3
  %s6 = scalar_select 0, %s5, %s3
  $region1: #{tpu_custom_call.1} parent=0
    #allocation2 [shape = 'u8[8192]{0}', space=vmem, size = 0x2000, scoped, tag = 'input window, operand 0']
    #allocation3 [shape = 's32[2]{0}', space=sflag, size = 0x8, scoped, tag = 'scoped memory for tpu_custom_call.1']
    #allocation4 [shape = 's32[2]{0}', space=sflag, size = 0x8, scoped, tag = 'scoped memory for tpu_custom_call.1']
    #allocation5 [shape = 'u8[2048]{0}', space=vmem, size = 0x800, scoped, tag = 'input window, operand 1, single buffered']
    #allocation6 [shape = 's32[1]{0}', space=sflag, size = 0x4, scoped, tag = 'scoped memory for tpu_custom_call.1']
    #allocation7 [shape = 'u8[8192]{0}', space=vmem, size = 0x2000, scoped, tag = 'output window, operand 0']
    %7 = vsyncpa [#allocation3], 0
    %s8 = scalar_lea.sflag [#allocation3], 1
    %9 = vsyncpa %s8, 0
    %10 = vsyncpa [#allocation6], 0
    %11 = vsyncpa [#allocation4], 0
    %s12 = scalar_lea.sflag [#allocation4], 1
    %13 = vsyncpa %s12, 0
    loop: start=0, step=1, limit=4
    $region2: #{tpu_custom_call.1} parent=1 // loop_pre_header
      _
    $region3: #{tpu_custom_call.1} parent=1 // loop_header
      %s15 = sphi 0, %s19
      %p16 = scmp.ge.s32.totalorder %s15, 4
      %s22 = sphi 0, %s34
      %s23 = sphi 0, %s30
      %s24 = sphi 0, %s22
      %s25 = sphi 0, %s23
      %s26 = sphi 0, %s24
      %s27 = sphi 0, %s25
      %s39 = sphi 0, %s41
      %s42 = sphi 0, %s39
      %s43 = sphi 0, %s42
      %s59 = sphi 0, %s43
      %s63 = sphi 0, %s63
      %s65 = sphi 0, %s63
      %s66 = sphi 0, %s65
      %s80 = sphi 0, %s66
      %s88 = sphi 0, %s90
      %s91 = sphi 0, %s88
      %s92 = sphi 0, %s91
      %s108 = sphi 0, %s92
    $region4: #{tpu_custom_call.1} parent=1 // loop_header_branch
      %18 = sbr.rel (%p16) target = $region8
    $region5: #{tpu_custom_call.1} parent=1 // loop_body
      %s20 = ssub.s32 %s15, 1
      %s21 = ssub.s32 %s15, 2
      %s28 = sadd.s32 1, %s23
      %p29 = scmp.ge.s32.totalorder %s28, 1
      %s30 = scalar_select %p29, 0, %s28
      %s31 = sadd.s32 1, %s22
      %s32 = scalar_select %p29, %s31, %s22
      %p33 = scmp.ge.s32.totalorder %s32, 2
      %s34 = scalar_select %p33, 0, %s32
      %s35 = ssub.s32 %s22, %s34
      %s36 = ssub.s32 %s23, %s30
      %s37 = sor.u32 %s35, %s36
      %p38 = scmp.eq.s32.totalorder %s37, 0
      %s40 = sadd.s32 %s39, 1
      %s41 = scalar_select %p38, %s39, %s40
      %p44 = pneg %p38
      %p45 = scmp.eq.s32.totalorder %s15, 1
      %p46 = por %p44, %p45
      %p47 = scmp.ne.s32.totalorder %s39, %s42
      %p48 = scmp.eq.s32.totalorder %s15, 0
      %p49 = por %p47, %p48
      %p50 = scmp.ne.s32.totalorder %s39, %s42
      %p51 = scmp.eq.s32.totalorder %s20, 1
      %p52 = por %p50, %p51
      %p53 = scmp.ne.s32.totalorder %s42, %s43
      %p54 = scmp.eq.s32.totalorder %s20, 0
      %p55 = por %p53, %p54
      %p56 = scmp.ne.s32.totalorder %s42, %s43
      %p57 = scmp.eq.s32.totalorder %s21, 1
      %p58 = por %p56, %p57
      %p60 = scmp.ne.s32.totalorder %s43, %s59
      %p61 = scmp.eq.s32.totalorder %s21, 0
      %p62 = por %p60, %p61
      %s64 = sadd.s32 %s63, 1
      %p67 = scmp.eq.s32.totalorder %s15, 1
      %p68 = scmp.ne.s32.totalorder %s63, %s65
      %p69 = scmp.eq.s32.totalorder %s15, 0
      %p70 = por %p68, %p69
      %p71 = scmp.ne.s32.totalorder %s63, %s65
      %p72 = scmp.eq.s32.totalorder %s20, 1
      %p73 = por %p71, %p72
      %p74 = scmp.ne.s32.totalorder %s65, %s66
      %p75 = scmp.eq.s32.totalorder %s20, 0
      %p76 = por %p74, %p75
      %p77 = scmp.ne.s32.totalorder %s65, %s66
      %p78 = scmp.eq.s32.totalorder %s21, 1
      %p79 = por %p77, %p78
      %p81 = scmp.ne.s32.totalorder %s66, %s80
      %p82 = scmp.eq.s32.totalorder %s21, 0
      %p83 = por %p81, %p82
      %s84 = ssub.s32 %s22, %s34
      %s85 = ssub.s32 %s23, %s30
      %s86 = sor.u32 %s84, %s85
      %p87 = scmp.eq.s32.totalorder %s86, 0
      %s89 = sadd.s32 %s88, 1
      %s90 = scalar_select %p87, %s88, %s89
      %p93 = pneg %p87
      %p94 = scmp.eq.s32.totalorder %s15, 1
      %p95 = por %p93, %p94
      %p96 = scmp.ne.s32.totalorder %s88, %s91
      %p97 = scmp.eq.s32.totalorder %s15, 0
      %p98 = por %p96, %p97
      %p99 = scmp.ne.s32.totalorder %s88, %s91
      %p100 = scmp.eq.s32.totalorder %s20, 1
      %p101 = por %p99, %p100
      %p102 = scmp.ne.s32.totalorder %s91, %s92
      %p103 = scmp.eq.s32.totalorder %s20, 0
      %p104 = por %p102, %p103
      %p105 = scmp.ne.s32.totalorder %s91, %s92
      %p106 = scmp.eq.s32.totalorder %s21, 1
      %p107 = por %p105, %p106
      %p109 = scmp.ne.s32.totalorder %s92, %s108
      %p110 = scmp.eq.s32.totalorder %s21, 0
      %p111 = por %p109, %p110
      %p112 = scmp.le.s32.totalorder 1, %s15
      %p113 = scmp.lt.s32.totalorder %s15, 3
      %p114 = pnand %p112, %p113
      %p115 = pneg %p114
      // Predicated region
      $region9: #{tpu_custom_call.1} parent=5 // pred_check
        _
      $region10: #{tpu_custom_call.1} parent=5 // pred_check_branch
        %117 = sbr.rel (%p114) target = $region12
      $region11: #{tpu_custom_call.1} parent=5 // pred_region
        %s118 = ssub.s32 %s15, 1
        // Predicated region
        $region13: #{tpu_custom_call.1} parent=11 // pred_check
          %p119 = pneg %p76
        $region14: #{tpu_custom_call.1} parent=11 // pred_check_branch
          %121 = sbr.rel (%p119) target = $region16
        $region15: #{tpu_custom_call.1} parent=11 // pred_region
          %s123 = ssub.s32 64, 64
          %124 = vsyncadd [#allocation6], %s123
          %s126 = sshll.u32 [#allocation5], 4
          %s127 = int_to_ptr.vmem [resolvable:$true] %s126
          %129 = dma.hbm_to_vmem [thread:$0]  %s1, 64, %s127, [#allocation6]
        $region16: #{tpu_custom_call.1} parent=11 // pred_fallthru
          _
      $region12: #{tpu_custom_call.1} parent=5 // pred_fallthru
        _
      %p130 = scmp.lt.s32.totalorder %s15, 2
      // Predicated region
      $region17: #{tpu_custom_call.1} parent=5 // pred_check
        %p131 = pneg %p130
      $region18: #{tpu_custom_call.1} parent=5 // pred_check_branch
        %133 = sbr.rel (%p131) target = $region20
      $region19: #{tpu_custom_call.1} parent=5 // pred_region
        // Predicated region
        $region21: #{tpu_custom_call.1} parent=19 // pred_check
          %p134 = pneg %p49
        $region22: #{tpu_custom_call.1} parent=19 // pred_check_branch
          %136 = sbr.rel (%p134) target = $region24
        $region23: #{tpu_custom_call.1} parent=19 // pred_region
          %s137 = sand.u32 %s39, 1
          %s138 = scalar_lea.sflag [#allocation3], %s137
          %s139 = sand.u32 %s39, 1
          %s140 = smul.addr %s139, 8
          %s141 = scalar_lea.vmem [#allocation2], %s140
          %s142 = smul.u32 2, %s23
          %s144 = ssub.s32 128, 128
          %145 = vsyncadd %s138, %s144
          %s146 = smul.addr %s22, 2
          %s147 = sadd.s32 %s142, %s146
          %s148 = smul.addr %s147, 64
          %s149 = scalar_lea.hbm %s0, %s148
          %s151 = sshll.u32 %s141, 4
          %s152 = int_to_ptr.vmem [resolvable:$true] %s151
          %154 = dma.hbm_to_vmem [thread:$0]  %s149, 128, %s152, %s138
        $region24: #{tpu_custom_call.1} parent=19 // pred_fallthru
          _
      $region20: #{tpu_custom_call.1} parent=5 // pred_fallthru
        _
      %p155 = scmp.le.s32.totalorder 1, %s15
      %p156 = scmp.lt.s32.totalorder %s15, 3
      %p157 = pnand %p155, %p156
      %p158 = pneg %p157
      // Predicated region
      $region25: #{tpu_custom_call.1} parent=5 // pred_check
        _
      $region26: #{tpu_custom_call.1} parent=5 // pred_check_branch
        %160 = sbr.rel (%p157) target = $region28
      $region27: #{tpu_custom_call.1} parent=5 // pred_region
        %s161 = ssub.s32 %s15, 1
        %s162 = sand.u32 %s42, 1
        %s163 = scalar_lea.sflag [#allocation3], %s162
        %s164 = sand.u32 %s42, 1
        %s165 = smul.addr %s164, 8
        %s166 = scalar_lea.vmem [#allocation2], %s165
        // Predicated region
        $region29: #{tpu_custom_call.1} parent=27 // pred_check
          %p167 = pneg %p55
        $region30: #{tpu_custom_call.1} parent=27 // pred_check_branch
          %169 = sbr.rel (%p167) target = $region32
        $region31: #{tpu_custom_call.1} parent=27 // pred_region
          %170 = dma.done %s163, 128
        $region32: #{tpu_custom_call.1} parent=27 // pred_fallthru
          _
        // Predicated region
        $region33: #{tpu_custom_call.1} parent=27 // pred_check
          %p171 = pneg %p76
        $region34: #{tpu_custom_call.1} parent=27 // pred_check_branch
          %173 = sbr.rel (%p171) target = $region36
        $region35: #{tpu_custom_call.1} parent=27 // pred_region
          %174 = dma.done [#allocation6], 64
        $region36: #{tpu_custom_call.1} parent=27 // pred_fallthru
          _
        %s175 = sand.u32 %s42, 1
        %s176 = scalar_lea.sflag [#allocation3], %s175
        %s177 = sand.u32 %s42, 1
        %s178 = smul.addr %s177, 8
        %s179 = scalar_lea.vmem [#allocation2], %s178
        %p180 = pneg %p55
        %p181 = pneg %p52
        %p182 = pneg %p76
        %p183 = pneg %p73
        %p184 = pneg %p104
        %p185 = pneg %p101
        %s186 = sand.u32 %s91, 1
        %s187 = scalar_lea.sflag [#allocation4], %s186
        %s188 = sand.u32 %s91, 1
        %s189 = smul.addr %s188, 8
        %s190 = scalar_lea.vmem [#allocation7], %s189
        %s191 = smul.u32 2, %s25
        %s192 = smul.u32 2, %s25
        %v193 = vld [vmem:[%s166] sm:$0xff]
        %v194 = vld [vmem:[#allocation5] sm:$0xf]
        %196 = vset.pattern.permute.xlu0 0
        %197 = vperm.xlu0 %196, %v194
        %v198 = vpop.permute.xlu0 %197
        %v201 = vlaneseq
        %v202 = vshrl.u32 %v201, 7
        %v203 = vsub.s32 0, %v202
        %v204 = vrot.slane %v193, %v203
        %v205 = vlaneseq
        %v206 = vshrl.u32 %v205, 7
        %v207 = vsub.s32 4, %v206
        %v208 = vrot.slane %v193, %v207
        %v211 = vlaneseq
        %v212 = vshrl.u32 %v211, 7
        %v213 = vsub.s32 0, %v212
        %v214 = vrot.slane %v204, %v213
        %v215 = vlaneseq
        %v216 = vshrl.u32 %v215, 7
        %v217 = vsub.s32 0, %v216
        %v218 = vrot.slane %v208, %v217
        %v219 = vmul.f32 %v198, %v214
        %v220 = vmul.f32 %v198, %v218
        %221 = vset.pattern.permute.xlu0 1
        %222 = vperm.xlu0 %221, %v194
        %v223 = vpop.permute.xlu0 %222
        %v225 = vlaneseq
        %v226 = vshrl.u32 %v225, 7
        %v227 = vsub.s32 1, %v226
        %v228 = vrot.slane %v193, %v227
        %v229 = vlaneseq
        %v230 = vshrl.u32 %v229, 7
        %v231 = vsub.s32 5, %v230
        %v232 = vrot.slane %v193, %v231
        %v235 = vlaneseq
        %v236 = vshrl.u32 %v235, 7
        %v237 = vsub.s32 1, %v236
        %v238 = vrot.slane %v228, %v237
        %v239 = vlaneseq
        %v240 = vshrl.u32 %v239, 7
        %v241 = vsub.s32 1, %v240
        %v242 = vrot.slane %v232, %v241
        %v243 = vmul.f32 %v223, %v238
        %v244 = vmul.f32 %v223, %v242
        %v245 = vadd.f32 %v219, %v243
        %v246 = vadd.f32 %v220, %v244
        %247 = vset.pattern.permute.xlu0 2
        %248 = vperm.xlu0 %247, %v194
        %v249 = vpop.permute.xlu0 %248
        %v251 = vlaneseq
        %v252 = vshrl.u32 %v251, 7
        %v253 = vsub.s32 2, %v252
        %v254 = vrot.slane %v193, %v253
        %v255 = vlaneseq
        %v256 = vshrl.u32 %v255, 7
        %v257 = vsub.s32 6, %v256
        %v258 = vrot.slane %v193, %v257
        %v261 = vlaneseq
        %v262 = vshrl.u32 %v261, 7
        %v263 = vsub.s32 2, %v262
        %v264 = vrot.slane %v254, %v263
        %v265 = vlaneseq
        %v266 = vshrl.u32 %v265, 7
        %v267 = vsub.s32 2, %v266
        %v268 = vrot.slane %v258, %v267
        %v269 = vmul.f32 %v249, %v264
        %v270 = vmul.f32 %v249, %v268
        %v271 = vadd.f32 %v245, %v269
        %v272 = vadd.f32 %v246, %v270
        %273 = vset.pattern.permute.xlu0 3
        %274 = vperm.xlu0 %273, %v194
        %v275 = vpop.permute.xlu0 %274
        %v277 = vlaneseq
        %v278 = vshrl.u32 %v277, 7
        %v279 = vsub.s32 3, %v278
        %v280 = vrot.slane %v193, %v279
        %v281 = vlaneseq
        %v282 = vshrl.u32 %v281, 7
        %v283 = vsub.s32 7, %v282
        %v284 = vrot.slane %v193, %v283
        %v287 = vlaneseq
        %v288 = vshrl.u32 %v287, 7
        %v289 = vsub.s32 3, %v288
        %v290 = vrot.slane %v280, %v289
        %v291 = vlaneseq
        %v292 = vshrl.u32 %v291, 7
        %v293 = vsub.s32 3, %v292
        %v294 = vrot.slane %v284, %v293
        %v295 = vmul.f32 %v275, %v290
        %v296 = vmul.f32 %v275, %v294
        %v297 = vadd.f32 %v271, %v295
        %v298 = vadd.f32 %v272, %v296
        %v299 = vcombine.high %v193, %v193
        %v301 = vadd.f32 %v297, %v193
        %v302 = vadd.f32 %v298, %v299
        %v305 = vcombine.low %v301, %v302
        %307 = vst [vmem:[%s190] sm:$0xff] %v305
        %s308 = sand.u32 %s91, 1
        %s309 = scalar_lea.sflag [#allocation4], %s308
        %s310 = sand.u32 %s91, 1
        %s311 = smul.addr %s310, 8
        %s312 = scalar_lea.vmem [#allocation7], %s311
        // Predicated region
        $region37: #{tpu_custom_call.1} parent=27 // pred_check
          %p313 = pneg %p101
        $region38: #{tpu_custom_call.1} parent=27 // pred_check_branch
          %315 = sbr.rel (%p313) target = $region40
        $region39: #{tpu_custom_call.1} parent=27 // pred_region
          %s316 = smul.u32 2, %s25
          %s318 = ssub.s32 128, 128
          %319 = vsyncadd %s309, %s318
          %s320 = smul.addr %s24, 2
          %s321 = sadd.s32 %s316, %s320
          %s322 = smul.addr %s321, 64
          %s323 = scalar_lea.hbm %s2, %s322
          %s325 = sshll.u32 %s312, 4
          %s326 = int_to_ptr.vmem [resolvable:$true] %s325
          %328 = dma.vmem_to_hbm [thread:$0]  %s326, 128, %s323, %s309
        $region40: #{tpu_custom_call.1} parent=27 // pred_fallthru
          _
      $region28: #{tpu_custom_call.1} parent=5 // pred_fallthru
        _
      %p329 = scmp.le.s32.totalorder 2, %s15
      // Predicated region
      $region41: #{tpu_custom_call.1} parent=5 // pred_check
        %p330 = pneg %p329
      $region42: #{tpu_custom_call.1} parent=5 // pred_check_branch
        %332 = sbr.rel (%p330) target = $region44
      $region43: #{tpu_custom_call.1} parent=5 // pred_region
        %s333 = ssub.s32 %s15, 2
        // Predicated region
        $region45: #{tpu_custom_call.1} parent=43 // pred_check
          %p334 = pneg %p107
        $region46: #{tpu_custom_call.1} parent=43 // pred_check_branch
          %336 = sbr.rel (%p334) target = $region48
        $region47: #{tpu_custom_call.1} parent=43 // pred_region
          %s337 = sand.u32 %s92, 1
          %s338 = scalar_lea.sflag [#allocation4], %s337
          %s339 = sand.u32 %s92, 1
          %s340 = smul.addr %s339, 8
          %s341 = scalar_lea.vmem [#allocation7], %s340
          %342 = dma.done %s338, 128
        $region48: #{tpu_custom_call.1} parent=43 // pred_fallthru
          _
      $region44: #{tpu_custom_call.1} parent=5 // pred_fallthru
        _
    $region6: #{tpu_custom_call.1} parent=1 // loop_footer
      %s19 = sadd.s32 1, %s15
    $region7: #{tpu_custom_call.1} parent=1 // loop_footer_branch
      %14 = sbr.rel target = $region3
    $region8: #{tpu_custom_call.1} parent=1 // loop_exit
      _
    %343 = vsyncpa [#allocation3], 1
    %s344 = scalar_lea.sflag [#allocation3], 1
    %345 = vsyncpa %s344, 1
    %346 = vsyncpa [#allocation6], 1
    %347 = vsyncpa [#allocation4], 1
    %s348 = scalar_lea.sflag [#allocation4], 1
    %349 = vsyncpa %s348, 1

</llo_original>
